<compile_context>
chip_gen: v5e
topology: v5e:2x2
jax: 0.10.0
libtpu: 0.0.40
codegen_flags: <defaults>
</compile_context>

<pallas_src>
import math
import functools

import jax
import jax.numpy as jnp
from jax.experimental import pallas as pl
from jax.experimental.pallas import tpu as pltpu


def make_pe_buffer(d_model, max_len=1000, dtype=jnp.float32):
    """Deterministic sinusoidal pe buffer, same math as the module's __init__."""
    position = jnp.arange(0, max_len, dtype=jnp.float32)[:, None]               # (L, 1)
    div_term = jnp.exp(
        jnp.arange(0, d_model, 2, dtype=jnp.float32) * (-math.log(10000.0) / d_model)
    )                                                                            # (D/2,)
    pe = jnp.zeros((max_len, d_model), dtype=jnp.float32)
    pe = pe.at[:, 0::2].set(jnp.sin(position * div_term))
    pe = pe.at[:, 1::2].set(jnp.cos(position * div_term))
    return pe[:, None, :].astype(dtype)                                          # (L, 1, D)


def _pe_add_kernel(x_ref, pe_ref, o_ref):
    # (TS, B, D) + (TS, 1, D) broadcast; operands already in the output dtype.
    o_ref[...] = x_ref[...] + pe_ref[...][:, None, :]


def _pe_add_dropout_kernel(x_ref, pe_ref, bits_ref, o_ref, *, threshold, inv_keep):
    y = x_ref[...] + pe_ref[...][:, None, :]
    # Inverted dropout via integer threshold compare: P(bits >= threshold) = 1 - p.
    keep = bits_ref[...] >= jnp.uint32(threshold)
    o_ref[...] = jnp.where(keep, y * inv_keep, 0.0).astype(o_ref.dtype)


def _choose_seq_tile(seq_len, row_bytes, target_bytes=4 << 20):
    """Seq-tile rows so one x tile is ~target_bytes; multiple of 8 for layout."""
    ts = max(8, target_bytes // max(1, row_bytes))
    ts = min(ts, ((seq_len + 7) // 8) * 8)     # no point exceeding the seq extent
    return int(max(8, (ts // 8) * 8))


def positional_encoding_forward(x, pe, *, p=0.1, train=False, seed=0):
    """dropout(x + pe[:x.shape[1], :]) — fused add + dropout, tiled over seq."""
    assert x.ndim == 3 and pe.ndim == 3 and pe.shape[1] == 1
    S, B, D = x.shape
    max_len = pe.shape[0]
    L = x.shape[1]                              # mirrors torch: self.pe[:x.size(1), :]
    assert D == pe.shape[2], "d_model mismatch"
    assert L <= max_len, "x.size(1) exceeds pe max_len"
    out_shape = jnp.broadcast_shapes(x.shape, (L, 1, D))
    # TODO(synk): degenerate size-1 broadcast cases (S==1 or B==1) are not handled;
    # the module is only usable when S == x.size(1), which is what we support.
    assert out_shape == x.shape and L == S, "kernel requires x.shape[0] == x.shape[1]"

    pe2d = pe[:, 0, :].astype(x.dtype)          # (max_len, D): drop padded singleton sublane
    ts = _choose_seq_tile(S, B * D * x.dtype.itemsize)
    grid = (pl.cdiv(S, ts),)

    x_spec = pl.BlockSpec((ts, B, D), lambda i: (i, 0, 0))
    pe_spec = pl.BlockSpec((ts, D), lambda i: (i, 0))
    bits_spec = pl.BlockSpec((ts, B, D), lambda i: (i, 0, 0))
    out_spec = pl.BlockSpec((ts, B, D), lambda i: (i, 0, 0))
    cparams = pltpu.CompilerParams(
        dimension_semantics=("parallel",),      # shard seq tiles across v7x's 2 TCs
        vmem_limit_bytes=48 * 1024 * 1024,      # headroom under v7x's 64 MiB VMEM
    )
    out_sds = jax.ShapeDtypeStruct((S, B, D), x.dtype)

    use_dropout = bool(train) and float(p) > 0.0
    if not use_dropout:
        return pl.pallas_call(
            _pe_add_kernel,
            out_shape=out_sds,
            grid=grid,
            in_specs=[x_spec, pe_spec],
            out_specs=out_spec,
            compiler_params=cparams,
        )(x, pe2d)

    if float(p) >= 1.0:
        return jnp.zeros((S, B, D), x.dtype)

    # TODO(synk): random bits generated host-side with jax.random (extra |x|-sized
    # uint32 stream); pltpu.prng_random_bits would avoid it on real TPU but has no
    # interpret/CPU lowering, so keep the portable path. RNG stream differs from torch.
    bits = jax.random.bits(jax.random.PRNGKey(int(seed)), (S, B, D), dtype=jnp.uint32)
    threshold = min((1 << 32) - 1, int(round(float(p) * (1 << 32))))
    kernel = functools.partial(
        _pe_add_dropout_kernel,
        threshold=threshold,
        inv_keep=float(1.0 / (1.0 - float(p))),
    )
    return pl.pallas_call(
        kernel,
        out_shape=out_sds,
        grid=grid,
        in_specs=[x_spec, pe_spec, bits_spec],
        out_specs=out_spec,
        compiler_params=cparams,
    )(x, pe2d, bits)


if __name__ == "__main__":
    d_model = 32
    max_len = 64
    S = B = 8   # the module's pe[:x.size(1)] broadcast requires S == B

    key = jax.random.PRNGKey(0)
    x = jax.random.normal(key, (S, B, d_model), dtype=jnp.float32)
    pe = make_pe_buffer(d_model, max_len=max_len)

    ref = x + pe[:x.shape[1]]                     # (S,B,D) + (B,1,D), S == B

    # Eval mode: dropout is identity — must match the pure-JAX reference.
    out_eval = jax.block_until_ready(
        positional_encoding_forward(x, pe, p=0.1, train=False))
    assert out_eval.shape == ref.shape
    assert jnp.allclose(out_eval, ref, atol=1e-5, rtol=1e-5)

    # Train mode: fused inverted dropout. Kept entries must equal ref / (1 - p).
    p = 0.1
    out_train = jax.block_until_ready(
        positional_encoding_forward(x, pe, p=p, train=True, seed=1234))
    assert out_train.shape == ref.shape
    kept = out_train != 0.0
    scaled_ref = ref / (1.0 - p)
    assert jnp.allclose(jnp.where(kept, out_train, 0.0),
                        jnp.where(kept, scaled_ref, 0.0), atol=1e-5, rtol=1e-5)
    assert bool(jnp.any(~kept))                   # p=0.1 over 2048 elems -> some drops

    print("KERNEL_OK")
</pallas_src>

<mosaic_0001>
module attributes {stable_mosaic.version = 11 : i64} {
  func.func @_pe_add_kernel(%arg0: i32, %arg1: memref<8x8x32xf32, #tpu.memory_space<vmem>>, %arg2: memref<8x32xf32, #tpu.memory_space<vmem>>, %arg3: memref<8x8x32xf32, #tpu.memory_space<vmem>>) attributes {dimension_semantics = [#tpu.dimension_semantics<parallel>], iteration_bounds = array<i64: 1>, scalar_prefetch = 0 : i64, scratch_operands = 0 : i64, tpu.core_type = #tpu.core_type<tc>, window_params = [{transform_indices = @transform_0, window_bounds = array<i64: 8, 8, 32>}, {transform_indices = @transform_1, window_bounds = array<i64: 8, 32>}, {transform_indices = @transform_2, window_bounds = array<i64: 8, 8, 32>}]} {
    %c0 = arith.constant 0 : index
    %c0_0 = arith.constant 0 : index
    %c0_1 = arith.constant 0 : index
    %0 = vector.load %arg1[%c0, %c0_0, %c0_1] : memref<8x8x32xf32, #tpu.memory_space<vmem>>, vector<8x8x32xf32>
    %c0_2 = arith.constant 0 : index
    %c0_3 = arith.constant 0 : index
    %1 = vector.load %arg2[%c0_2, %c0_3] : memref<8x32xf32, #tpu.memory_space<vmem>>, vector<8x32xf32>
    %2 = vector.shape_cast %1 : vector<8x32xf32> to vector<8x1x32xf32>
    %3 = vector.broadcast %2 : vector<8x1x32xf32> to vector<8x8x32xf32>
    %4 = arith.addf %0, %3 : vector<8x8x32xf32>
    %c0_4 = arith.constant 0 : index
    %c0_5 = arith.constant 0 : index
    %c0_6 = arith.constant 0 : index
    %5 = vector.load %arg3[%c0_4, %c0_5, %c0_6] : memref<8x8x32xf32, #tpu.memory_space<vmem>>, vector<8x8x32xf32>
    tpu.vector_store %arg3[%c0_4, %c0_5, %c0_6], %4 {strides = array<i32>} : memref<8x8x32xf32, #tpu.memory_space<vmem>>, vector<8x8x32xf32>,
    return
  }
  func.func @transform_0(%arg0: i32) -> (i32, i32, i32) {
    %c0_i32 = arith.constant 0 : i32
    %c0_i32_0 = arith.constant 0 : i32
    %c0_i32_1 = arith.constant 0 : i32
    return %arg0, %c0_i32, %c0_i32_0 : i32, i32, i32
  }
  func.func @transform_1(%arg0: i32) -> (i32, i32) {
    %c0_i32 = arith.constant 0 : i32
    %c0_i32_0 = arith.constant 0 : i32
    return %arg0, %c0_i32 : i32, i32
  }
  func.func @transform_2(%arg0: i32) -> (i32, i32, i32) {
    %c0_i32 = arith.constant 0 : i32
    %c0_i32_0 = arith.constant 0 : i32
    %c0_i32_1 = arith.constant 0 : i32
    return %arg0, %c0_i32, %c0_i32_0 : i32, i32, i32
  }
}

</mosaic_0001>

<llo_original>
// kernel: tpu_custom_call.1
$region0: #{tpu_custom_call.1}
  #allocation0 [shape = 'u32[]', space=smem, size = 0x4, offset = 0x4, fixed_abs, tag = 'smem constant byte address 0x4 - core index']
  #allocation1 [shape = 'u32[72,128]{1,0:T(1,128)}', space=vmem, size = 0x9000, scoped, tag = 'internal scratch']
  %s0 = inlined_call_operand.vmem [shape: f32[8,8,32], index: 0, kind: input, shape index: {}]
  %s1 = inlined_call_operand.vmem [shape: f32[64,32], index: 1, kind: input, shape index: {}]
  %s2 = inlined_call_operand.hbm [shape: f32[8,8,32], index: 2, kind: output, shape index: {}]
  %s3 = sld [smem:[#allocation0]]
  $region18: #{tpu_custom_call.1} parent=0
    _
  %s5 = ssub.s32 1, %s3
  %s6 = scalar_select 0, %s5, %s3
  $region1: #{tpu_custom_call.1} parent=0
    #allocation2 [shape = 'u8[32768]{0}', space=vmem, size = 0x8000, scoped, tag = 'output window, operand 0, single buffered']
    #allocation3 [shape = 's32[1]{0}', space=sflag, size = 0x4, scoped, tag = 'scoped memory for tpu_custom_call.1']
    %7 = vsyncpa [#allocation3], 0
    // Predicated region
    $region2: #{tpu_custom_call.1} parent=1 // pred_check
      _
    $region3: #{tpu_custom_call.1} parent=1 // pred_check_branch
      %9 = sbr.rel (0) target = $region5
    $region4: #{tpu_custom_call.1} parent=1 // pred_region
      _
    $region5: #{tpu_custom_call.1} parent=1 // pred_fallthru
      _
    // Predicated region
    $region6: #{tpu_custom_call.1} parent=1 // pred_check
      _
    $region7: #{tpu_custom_call.1} parent=1 // pred_check_branch
      %11 = sbr.rel (0) target = $region9
    $region8: #{tpu_custom_call.1} parent=1 // pred_region
      _
    $region9: #{tpu_custom_call.1} parent=1 // pred_fallthru
      _
    %v12 = vld [vmem:[%s0] sm:$0xff]
    %v13 = vld [vmem:[%s0 + $0x8] sm:$0xff]
    %v14 = vld [vmem:[%s0 + $0x10] sm:$0xff]
    %v15 = vld [vmem:[%s0 + $0x18] sm:$0xff]
    %v16 = vld [vmem:[%s0 + $0x20] sm:$0xff]
    %v17 = vld [vmem:[%s0 + $0x28] sm:$0xff]
    %v18 = vld [vmem:[%s0 + $0x30] sm:$0xff]
    %v19 = vld [vmem:[%s0 + $0x38] sm:$0xff]
    %v20 = vld [vmem:[%s1] sm:$0xff]
    %v22 = vrot.slane %v20, 1
    %v23 = vrot.slane %v20, 2
    %v24 = vrot.slane %v20, 3
    %v25 = vrot.slane %v20, 4
    %v26 = vrot.slane %v20, 5
    %v27 = vrot.slane %v20, 6
    %v28 = vrot.slane %v20, 7
    %v29 = vperm.slane %v20, 0
    %v30 = vperm.slane %v22, 0
    %v31 = vperm.slane %v23, 0
    %v32 = vperm.slane %v24, 0
    %v33 = vperm.slane %v25, 0
    %v34 = vperm.slane %v26, 0
    %v35 = vperm.slane %v27, 0
    %v36 = vperm.slane %v28, 0
    %v45 = vadd.f32 %v12, %v29
    %v46 = vadd.f32 %v13, %v30
    %v47 = vadd.f32 %v14, %v31
    %v48 = vadd.f32 %v15, %v32
    %v49 = vadd.f32 %v16, %v33
    %v50 = vadd.f32 %v17, %v34
    %v51 = vadd.f32 %v18, %v35
    %v52 = vadd.f32 %v19, %v36
    %vm53 = vcmask 261120
    %54 = vst.msk [vmem:[#allocation2] sm:$0xff] %vm53, %v45
    %55 = vst.msk [vmem:[#allocation2 + $0x8] sm:$0xff] %vm53, %v46
    %56 = vst.msk [vmem:[#allocation2 + $0x10] sm:$0xff] %vm53, %v47
    %57 = vst.msk [vmem:[#allocation2 + $0x18] sm:$0xff] %vm53, %v48
    %58 = vst.msk [vmem:[#allocation2 + $0x20] sm:$0xff] %vm53, %v49
    %59 = vst.msk [vmem:[#allocation2 + $0x28] sm:$0xff] %vm53, %v50
    %60 = vst.msk [vmem:[#allocation2 + $0x30] sm:$0xff] %vm53, %v51
    %61 = vst.msk [vmem:[#allocation2 + $0x38] sm:$0xff] %vm53, %v52
    // Predicated region
    $region10: #{tpu_custom_call.1} parent=1 // pred_check
      _
    $region11: #{tpu_custom_call.1} parent=1 // pred_check_branch
      %63 = sbr.rel (0) target = $region13
    $region12: #{tpu_custom_call.1} parent=1 // pred_region
      %65 = vsyncadd [#allocation3], 0
      %s66 = sshll.u32 [#allocation2], 4
      %s67 = int_to_ptr.vmem [resolvable:$true] %s66
      %s68 = sshll.u32 %s2, 4
      %s69 = int_to_ptr.hbm [resolvable:$true] %s68
      %74 = dma.vmem_to_hbm [thread:$0]  %s67, 1024, %s69, [#allocation3], 128, 128, 8
    $region13: #{tpu_custom_call.1} parent=1 // pred_fallthru
      _
    // Predicated region
    $region14: #{tpu_custom_call.1} parent=1 // pred_check
      _
    $region15: #{tpu_custom_call.1} parent=1 // pred_check_branch
      %76 = sbr.rel (0) target = $region17
    $region16: #{tpu_custom_call.1} parent=1 // pred_region
      %78 = dma.done [#allocation3], 1024
    $region17: #{tpu_custom_call.1} parent=1 // pred_fallthru
      _
    %79 = vsyncpa [#allocation3], 1

</llo_original>
